<compile_context>
chip_gen: v7x
topology: tpu7x:2x2x1
jax: 0.10.0
libtpu: 0.0.40
codegen_flags: <defaults>
</compile_context>

<pallas_src>
import functools

import jax
import jax.numpy as jnp
from jax import lax
from jax.experimental import pallas as pl
from jax.experimental.pallas import tpu as pltpu


# ---------------------------------------------------------------------------
# Fused kernel: depthwise 3x3 -> [1x1 conv + graph mix + BN1 + ReLU] matmul ->
#               [temporal conv + BN2 + ReLU] matmul, Nb samples per grid step.
# ---------------------------------------------------------------------------
def _fused_sstgc_kernel(x_ref, w1v_ref, weff_ref, sh1_ref, mask_ref,
                        wtb_ref, sh2_ref, o_ref, *,
                        Nb, tk, Tf, To, WL, CV, mm_dtype):
    f32 = jnp.float32
    w1v = w1v_ref[...]                                      # (9, WL) f32

    # ---- 1) depthwise 3x3 conv, all channels at once (packed in lanes) ----
    h_rows = []
    for s in range(Nb):
        xs = x_ref[s]                                       # (Tf+2, WL+2)
        cols = [xs[:, dj:dj + WL] for dj in range(3)]       # hoisted dj shifts
        accs = []
        for di in range(3):                                 # independent accs
            a = w1v[3 * di:3 * di + 1, :] * cols[0][di:di + Tf, :]
            a = a + w1v[3 * di + 1:3 * di + 2, :] * cols[1][di:di + Tf, :]
            a = a + w1v[3 * di + 2:3 * di + 3, :] * cols[2][di:di + Tf, :]
            accs.append(a)
        h_rows.append(accs[0] + accs[1] + accs[2])          # (Tf, WL)
    H = h_rows[0] if Nb == 1 else jnp.concatenate(h_rows, axis=0)

    # ---- 2+3) 1x1 conv + graph mix + BN1 + ReLU: one MXU matmul ----------
    y1 = jnp.dot(H.astype(mm_dtype), weff_ref[...],
                 preferred_element_type=f32)                # (Nb*Tf, CV)
    # shift row carries conv1/conv2 biases * graph mix * BN1; mask zeroes the
    # temporal zero-pad rows so they act as the temporal conv's padding.
    y1 = jnp.maximum(y1 + sh1_ref[...], 0.0) * mask_ref[...]

    # ---- 4) temporal (tk,1) conv + BN2 + ReLU: one MXU matmul ------------
    y2_rows = []
    for s in range(Nb):
        y1_s = y1[s * Tf:(s + 1) * Tf, :]
        y2_rows.append(jnp.concatenate(
            [y1_s[j:j + To, :] for j in range(tk)], axis=1))  # (To, tk*CV)
    Y2 = y2_rows[0] if Nb == 1 else jnp.concatenate(y2_rows, axis=0)
    out = jnp.dot(Y2.astype(mm_dtype), wtb_ref[...],
                  preferred_element_type=f32)               # (Nb*To, CV)
    out = jnp.maximum(out + sh2_ref[...], 0.0)

    for s in range(Nb):                                     # lane-dense store
        o_ref[s] = out[s * To:(s + 1) * To, :].astype(o_ref.dtype)


def _samples_per_block(n):
    """Largest Nb<=8 dividing N that still leaves >=2 grid steps (v7x 2 TCs)."""
    nb = 1
    for cand in range(2, min(n, 8) + 1):
        if n % cand == 0 and n // cand >= 2:
            nb = cand
    return nb


# ---------------------------------------------------------------------------
# Full SSTGC_block forward: wrapper folds everything, one pallas_call.
# ---------------------------------------------------------------------------
def sstgc_forward(x, A, params, *, s_kernel_size, t_kernel_size, stride,
                  matmul_dtype=jnp.float32):
    N, Cin, T, V = x.shape
    K = s_kernel_size
    tk = t_kernel_size
    KC = params["conv2_w"].shape[0]
    Cout = KC // K
    Pt = (tk - 1) // 2
    Tf = T + 2 * Pt                 # rows incl. temporal zero-pad rows
    To = Tf - tk + 1                # stride-1 temporal output length
    WL = Cin * (V + 2)              # packed depthwise lane width (w/ pad cols)
    CV = Cout * V
    eps = 1e-5
    f32 = jnp.float32

    # ---- fold BN (inference mode), biases and the graph mix (f32) ---------
    sc1 = params["bn1_gamma"] * lax.rsqrt(params["bn1_var"] + eps)
    sh1 = params["bn1_beta"] - params["bn1_mean"] * sc1
    sc2 = params["bn2_gamma"] * lax.rsqrt(params["bn2_var"] + eps)
    sh2 = params["bn2_beta"] - params["bn2_mean"] * sc2

    AM = (A * params["M"]).astype(f32)                       # (K, V, V)
    w2 = params["conv2_w"][:, :, 0, 0].reshape(K, Cout, Cin)  # [k, c, ci]
    b2 = params["conv2_b"].reshape(K, Cout)
    b1 = params["conv1_b"]

    # W_eff[(ci,v_in),(c,w)] = sum_k w2[k,c,ci] * AM[k,v_in,w], BN1 scale
    # folded into columns; zero rows at each channel's two 3x3-pad lanes.
    wmix = jnp.einsum("kci,kvw->ivcw", w2, AM) * sc1[None, None, :, None]
    weff = jnp.zeros((Cin, V + 2, Cout, V), f32).at[:, 1:V + 1].set(wmix)
    weff = weff.reshape(WL, CV).astype(matmul_dtype)

    # conv1 bias -> conv2 -> graph mix -> BN1 shift, all folded to one row.
    bias_kc = b2 + jnp.einsum("kci,i->kc", w2, b1)            # (K, Cout)
    b_tot = jnp.einsum("kc,kw->cw", bias_kc, AM.sum(axis=1))  # (Cout, V)
    shift1 = (b_tot * sc1[:, None] + sh1[:, None]).reshape(1, CV)

    # depthwise weights broadcast per channel over its (V+2)-lane block.
    w1k = params["conv1_w"][:, 0].reshape(Cin, 9)
    w1v = jnp.repeat(w1k.T[:, :, None], V + 2, axis=2).reshape(9, WL)

    # temporal conv as one folded block-diagonal-in-V matmul weight (+ BN2).
    wt = params["tconv_w"][:, :, :, 0]                        # (co, ci, j)
    wtbig = jnp.einsum("oij,vw->jivow", wt * sc2[:, None, None],
                       jnp.eye(V, dtype=f32)).reshape(tk * CV, CV)
    wtbig = wtbig.astype(matmul_dtype)
    shift2 = jnp.broadcast_to((params["tconv_b"] * sc2 + sh2)[:, None],
                              (Cout, V)).reshape(1, CV)

    # ---- pack input: channels into lanes (one cheap XLA relayout) ---------
    xp = jnp.pad(x, ((0, 0), (0, 0), (Pt + 1, Pt + 1), (1, 1)))
    xw = xp.transpose(0, 2, 1, 3).reshape(N, Tf + 2, WL)
    xw = jnp.pad(xw, ((0, 0), (0, 0), (1, 1)))                # (N, Tf+2, WL+2)

    Nb = _samples_per_block(N)
    rowm = ((jnp.arange(Tf) >= Pt) & (jnp.arange(Tf) < Pt + T)).astype(f32)
    row_mask = jnp.tile(rowm, (Nb,))[:, None]                 # (Nb*Tf, 1)

    kernel = functools.partial(_fused_sstgc_kernel, Nb=Nb, tk=tk, Tf=Tf,
                               To=To, WL=WL, CV=CV, mm_dtype=matmul_dtype)

    def _const(shape):
        return pl.BlockSpec(shape, lambda n: (0,) * len(shape))

    out = pl.pallas_call(
        kernel,
        out_shape=jax.ShapeDtypeStruct((N, To, CV), f32),
        grid=(N // Nb,),
        in_specs=[
            pl.BlockSpec((Nb, Tf + 2, WL + 2), lambda n: (n, 0, 0)),
            _const((9, WL)),          # depthwise weights (VMEM, resident)
            _const((WL, CV)),         # W_eff            (VMEM, resident)
            _const((1, CV)),          # shift1
            _const((Nb * Tf, 1)),     # temporal-pad row mask
            _const((tk * CV, CV)),    # folded temporal weight
            _const((1, CV)),          # shift2
        ],
        out_specs=pl.BlockSpec((Nb, To, CV), lambda n: (n, 0, 0)),
        compiler_params=pltpu.CompilerParams(
            dimension_semantics=("parallel",),
            vmem_limit_bytes=32 * 1024 * 1024),
    )(xw, w1v, weff, shift1, row_mask, wtbig, shift2)

    # lane-dense kernel layout (N, To, Cout*V) -> reference (N, Cout, To, V)
    out = out.reshape(N, To, Cout, V).transpose(0, 2, 1, 3)
    if stride > 1:
        # TODO(synk): fold stride into the kernel's im2col rows.
        out = out[:, :, ::stride, :]
    return out


# ---------------------------------------------------------------------------
# Pure-JAX reference mirroring the PyTorch forward (eval mode).
# ---------------------------------------------------------------------------
def reference_forward(x, A, params, *, s_kernel_size, t_kernel_size, stride):
    eps = 1e-5
    K = s_kernel_size
    dn = ("NCHW", "OIHW", "NCHW")
    Cin = x.shape[1]
    y = lax.conv_general_dilated(x, params["conv1_w"], (1, 1), ((1, 1), (1, 1)),
                                 dimension_numbers=dn, feature_group_count=Cin)
    y = y + params["conv1_b"][None, :, None, None]
    y = lax.conv_general_dilated(y, params["conv2_w"], (1, 1), ((0, 0), (0, 0)),
                                 dimension_numbers=dn)
    y = y + params["conv2_b"][None, :, None, None]
    n, kc, t, v = y.shape
    y = y.reshape(n, K, kc // K, t, v)
    y = jnp.einsum("nkctv,kvw->nctw", y, A * params["M"])
    sc1 = params["bn1_gamma"] / jnp.sqrt(params["bn1_var"] + eps)
    sh1 = params["bn1_beta"] - params["bn1_mean"] * sc1
    y = jnp.maximum(y * sc1[None, :, None, None] + sh1[None, :, None, None], 0.0)
    pad = (t_kernel_size - 1) // 2
    y = lax.conv_general_dilated(y, params["tconv_w"], (stride, 1),
                                 ((pad, pad), (0, 0)), dimension_numbers=dn)
    y = y + params["tconv_b"][None, :, None, None]
    sc2 = params["bn2_gamma"] / jnp.sqrt(params["bn2_var"] + eps)
    sh2 = params["bn2_beta"] - params["bn2_mean"] * sc2
    return jnp.maximum(y * sc2[None, :, None, None] + sh2[None, :, None, None], 0.0)


if __name__ == "__main__":
    N, Cin, Cout, T, V, K, tk, stride = 2, 4, 8, 16, 16, 3, 3, 1

    key = jax.random.PRNGKey(0)
    ks = jax.random.split(key, 16)
    params = {
        "conv1_w": 0.2 * jax.random.normal(ks[0], (Cin, 1, 3, 3), jnp.float32),
        "conv1_b": 0.1 * jax.random.normal(ks[1], (Cin,), jnp.float32),
        "conv2_w": 0.2 * jax.random.normal(ks[2], (K * Cout, Cin, 1, 1), jnp.float32),
        "conv2_b": 0.1 * jax.random.normal(ks[3], (K * Cout,), jnp.float32),
        "M": 1.0 + 0.1 * jax.random.normal(ks[4], (K, V, V), jnp.float32),
        "tconv_w": 0.2 * jax.random.normal(ks[5], (Cout, Cout, tk, 1), jnp.float32),
        "tconv_b": 0.1 * jax.random.normal(ks[6], (Cout,), jnp.float32),
        "bn1_gamma": 1.0 + 0.1 * jax.random.normal(ks[7], (Cout,), jnp.float32),
        "bn1_beta": 0.1 * jax.random.normal(ks[8], (Cout,), jnp.float32),
        "bn1_mean": 0.1 * jax.random.normal(ks[9], (Cout,), jnp.float32),
        "bn1_var": jax.random.uniform(ks[10], (Cout,), jnp.float32, 0.5, 1.5),
        "bn2_gamma": 1.0 + 0.1 * jax.random.normal(ks[11], (Cout,), jnp.float32),
        "bn2_beta": 0.1 * jax.random.normal(ks[12], (Cout,), jnp.float32),
        "bn2_mean": 0.1 * jax.random.normal(ks[13], (Cout,), jnp.float32),
        "bn2_var": jax.random.uniform(ks[14], (Cout,), jnp.float32, 0.5, 1.5),
    }
    x = jax.random.normal(ks[15], (N, Cin, T, V), jnp.float32)
    A = 0.3 * jax.random.normal(jax.random.PRNGKey(1), (K, V, V), jnp.float32)

    ref = reference_forward(x, A, params, s_kernel_size=K,
                            t_kernel_size=tk, stride=stride)

    # f32 MXU operands (all generations) — tight check.
    fwd = jax.jit(functools.partial(sstgc_forward, s_kernel_size=K,
                                    t_kernel_size=tk, stride=stride))
    out = jax.block_until_ready(fwd(x, A, params))
    assert out.shape == ref.shape, (out.shape, ref.shape)
    if not jnp.allclose(out, ref, atol=1e-3, rtol=1e-3):
        raise AssertionError("Pallas (f32) output does not match reference")

    # bf16 MXU operands (v6e/v7x fast path) — loose check.
    fwd_bf16 = jax.jit(functools.partial(sstgc_forward, s_kernel_size=K,
                                         t_kernel_size=tk, stride=stride,
                                         matmul_dtype=jnp.bfloat16))
    out_bf16 = jax.block_until_ready(fwd_bf16(x, A, params))
    if not jnp.allclose(out_bf16, ref, atol=2e-2, rtol=2e-2):
        raise AssertionError("Pallas (bf16 matmul) output does not match reference")

    print("KERNEL_OK")
</pallas_src>

<mosaic_0001>
module attributes {stable_mosaic.version = 11 : i64} {
  func.func @_fused_sstgc_kernel(%arg0: i32, %arg1: memref<1x20x74xf32, #tpu.memory_space<vmem>>, %arg2: memref<9x72xf32, #tpu.memory_space<vmem>>, %arg3: memref<72x128xf32, #tpu.memory_space<vmem>>, %arg4: memref<1x128xf32, #tpu.memory_space<vmem>>, %arg5: memref<18x1xf32, #tpu.memory_space<vmem>>, %arg6: memref<384x128xf32, #tpu.memory_space<vmem>>, %arg7: memref<1x128xf32, #tpu.memory_space<vmem>>, %arg8: memref<1x16x128xf32, #tpu.memory_space<vmem>>) attributes {dimension_semantics = [#tpu.dimension_semantics<parallel>], iteration_bounds = array<i64: 2>, scalar_prefetch = 0 : i64, scratch_operands = 0 : i64, tpu.core_type = #tpu.core_type<tc>, window_params = [{transform_indices = @transform_0, window_bounds = array<i64: 1, 20, 74>}, {pipeline_mode = #tpu.pipeline_mode<synchronous>, transform_indices = @transform_1, window_bounds = array<i64: 9, 72>}, {pipeline_mode = #tpu.pipeline_mode<synchronous>, transform_indices = @transform_2, window_bounds = array<i64: 72, 128>}, {pipeline_mode = #tpu.pipeline_mode<synchronous>, transform_indices = @transform_3, window_bounds = array<i64: 1, 128>}, {pipeline_mode = #tpu.pipeline_mode<synchronous>, transform_indices = @transform_4, window_bounds = array<i64: 18, 1>}, {pipeline_mode = #tpu.pipeline_mode<synchronous>, transform_indices = @transform_5, window_bounds = array<i64: 384, 128>}, {pipeline_mode = #tpu.pipeline_mode<synchronous>, transform_indices = @transform_6, window_bounds = array<i64: 1, 128>}, {transform_indices = @transform_7, window_bounds = array<i64: 1, 16, 128>}]} {
    %c0 = arith.constant 0 : index
    %c0_0 = arith.constant 0 : index
    %0 = vector.load %arg2[%c0, %c0_0] : memref<9x72xf32, #tpu.memory_space<vmem>>, vector<9x72xf32>
    %c0_1 = arith.constant 0 : index
    %c0_2 = arith.constant 0 : index
    %c0_3 = arith.constant 0 : index
    %1 = vector.load %arg1[%c0_1, %c0_2, %c0_3] : memref<1x20x74xf32, #tpu.memory_space<vmem>>, vector<1x20x74xf32>
    %2 = vector.shape_cast %1 : vector<1x20x74xf32> to vector<20x74xf32>
    %3 = vector.extract_strided_slice %2 {offsets = [0, 0], sizes = [20, 72], strides = [1, 1]} : vector<20x74xf32> to vector<20x72xf32>
    %4 = vector.extract_strided_slice %2 {offsets = [0, 1], sizes = [20, 72], strides = [1, 1]} : vector<20x74xf32> to vector<20x72xf32>
    %5 = vector.extract_strided_slice %2 {offsets = [0, 2], sizes = [20, 72], strides = [1, 1]} : vector<20x74xf32> to vector<20x72xf32>
    %6 = vector.extract_strided_slice %0 {offsets = [0, 0], sizes = [1, 72], strides = [1, 1]} : vector<9x72xf32> to vector<1x72xf32>
    %7 = vector.extract_strided_slice %3 {offsets = [0, 0], sizes = [18, 72], strides = [1, 1]} : vector<20x72xf32> to vector<18x72xf32>
    %8 = vector.broadcast %6 : vector<1x72xf32> to vector<18x72xf32>
    %9 = arith.mulf %8, %7 : vector<18x72xf32>
    %10 = vector.extract_strided_slice %0 {offsets = [1, 0], sizes = [1, 72], strides = [1, 1]} : vector<9x72xf32> to vector<1x72xf32>
    %11 = vector.extract_strided_slice %4 {offsets = [0, 0], sizes = [18, 72], strides = [1, 1]} : vector<20x72xf32> to vector<18x72xf32>
    %12 = vector.broadcast %10 : vector<1x72xf32> to vector<18x72xf32>
    %13 = arith.mulf %12, %11 : vector<18x72xf32>
    %14 = arith.addf %9, %13 : vector<18x72xf32>
    %15 = vector.extract_strided_slice %0 {offsets = [2, 0], sizes = [1, 72], strides = [1, 1]} : vector<9x72xf32> to vector<1x72xf32>
    %16 = vector.extract_strided_slice %5 {offsets = [0, 0], sizes = [18, 72], strides = [1, 1]} : vector<20x72xf32> to vector<18x72xf32>
    %17 = vector.broadcast %15 : vector<1x72xf32> to vector<18x72xf32>
    %18 = arith.mulf %17, %16 : vector<18x72xf32>
    %19 = arith.addf %14, %18 : vector<18x72xf32>
    %20 = vector.extract_strided_slice %0 {offsets = [3, 0], sizes = [1, 72], strides = [1, 1]} : vector<9x72xf32> to vector<1x72xf32>
    %21 = vector.extract_strided_slice %3 {offsets = [1, 0], sizes = [18, 72], strides = [1, 1]} : vector<20x72xf32> to vector<18x72xf32>
    %22 = vector.broadcast %20 : vector<1x72xf32> to vector<18x72xf32>
    %23 = arith.mulf %22, %21 : vector<18x72xf32>
    %24 = vector.extract_strided_slice %0 {offsets = [4, 0], sizes = [1, 72], strides = [1, 1]} : vector<9x72xf32> to vector<1x72xf32>
    %25 = vector.extract_strided_slice %4 {offsets = [1, 0], sizes = [18, 72], strides = [1, 1]} : vector<20x72xf32> to vector<18x72xf32>
    %26 = vector.broadcast %24 : vector<1x72xf32> to vector<18x72xf32>
    %27 = arith.mulf %26, %25 : vector<18x72xf32>
    %28 = arith.addf %23, %27 : vector<18x72xf32>
    %29 = vector.extract_strided_slice %0 {offsets = [5, 0], sizes = [1, 72], strides = [1, 1]} : vector<9x72xf32> to vector<1x72xf32>
    %30 = vector.extract_strided_slice %5 {offsets = [1, 0], sizes = [18, 72], strides = [1, 1]} : vector<20x72xf32> to vector<18x72xf32>
    %31 = vector.broadcast %29 : vector<1x72xf32> to vector<18x72xf32>
    %32 = arith.mulf %31, %30 : vector<18x72xf32>
    %33 = arith.addf %28, %32 : vector<18x72xf32>
    %34 = vector.extract_strided_slice %0 {offsets = [6, 0], sizes = [1, 72], strides = [1, 1]} : vector<9x72xf32> to vector<1x72xf32>
    %35 = vector.extract_strided_slice %3 {offsets = [2, 0], sizes = [18, 72], strides = [1, 1]} : vector<20x72xf32> to vector<18x72xf32>
    %36 = vector.broadcast %34 : vector<1x72xf32> to vector<18x72xf32>
    %37 = arith.mulf %36, %35 : vector<18x72xf32>
    %38 = vector.extract_strided_slice %0 {offsets = [7, 0], sizes = [1, 72], strides = [1, 1]} : vector<9x72xf32> to vector<1x72xf32>
    %39 = vector.extract_strided_slice %4 {offsets = [2, 0], sizes = [18, 72], strides = [1, 1]} : vector<20x72xf32> to vector<18x72xf32>
    %40 = vector.broadcast %38 : vector<1x72xf32> to vector<18x72xf32>
    %41 = arith.mulf %40, %39 : vector<18x72xf32>
    %42 = arith.addf %37, %41 : vector<18x72xf32>
    %43 = vector.extract_strided_slice %0 {offsets = [8, 0], sizes = [1, 72], strides = [1, 1]} : vector<9x72xf32> to vector<1x72xf32>
    %44 = vector.extract_strided_slice %5 {offsets = [2, 0], sizes = [18, 72], strides = [1, 1]} : vector<20x72xf32> to vector<18x72xf32>
    %45 = vector.broadcast %43 : vector<1x72xf32> to vector<18x72xf32>
    %46 = arith.mulf %45, %44 : vector<18x72xf32>
    %47 = arith.addf %42, %46 : vector<18x72xf32>
    %48 = arith.addf %19, %33 : vector<18x72xf32>
    %49 = arith.addf %48, %47 : vector<18x72xf32>
    %c0_4 = arith.constant 0 : index
    %c0_5 = arith.constant 0 : index
    %50 = vector.load %arg3[%c0_4, %c0_5] : memref<72x128xf32, #tpu.memory_space<vmem>>, vector<72x128xf32>
    %cst = arith.constant dense<0.000000e+00> : vector<18x128xf32>
    %51 = tpu.matmul %49, %50, %cst {dimension_numbers = #tpu.dot_dimension_numbers<[1], [0], [0], [1], [0, 0, 1, 1], [], []>} : vector<18x72xf32>, vector<72x128xf32>, vector<18x128xf32> -> vector<18x128xf32>
    %c0_6 = arith.constant 0 : index
    %c0_7 = arith.constant 0 : index
    %52 = vector.load %arg4[%c0_6, %c0_7] : memref<1x128xf32, #tpu.memory_space<vmem>>, vector<1x128xf32>
    %53 = vector.broadcast %52 : vector<1x128xf32> to vector<18x128xf32>
    %54 = arith.addf %51, %53 : vector<18x128xf32>
    %cst_8 = arith.constant 0.000000e+00 : f32
    %55 = vector.broadcast %cst_8 : f32 to vector<18x128xf32>
    %56 = arith.maximumf %54, %55 : vector<18x128xf32>
    %c0_9 = arith.constant 0 : index
    %c0_10 = arith.constant 0 : index
    %57 = vector.load %arg5[%c0_9, %c0_10] : memref<18x1xf32, #tpu.memory_space<vmem>>, vector<18x1xf32>
    %58 = vector.broadcast %57 : vector<18x1xf32> to vector<18x128xf32>
    %59 = arith.mulf %56, %58 : vector<18x128xf32>
    %60 = vector.extract_strided_slice %59 {offsets = [0, 0], sizes = [16, 128], strides = [1, 1]} : vector<18x128xf32> to vector<16x128xf32>
    %61 = vector.extract_strided_slice %59 {offsets = [1, 0], sizes = [16, 128], strides = [1, 1]} : vector<18x128xf32> to vector<16x128xf32>
    %62 = vector.extract_strided_slice %59 {offsets = [2, 0], sizes = [16, 128], strides = [1, 1]} : vector<18x128xf32> to vector<16x128xf32>
    %63 = tpu.concatenate %60, %61, %62 in 1 : vector<16x128xf32>, vector<16x128xf32>, vector<16x128xf32> -> vector<16x384xf32>
    %c0_11 = arith.constant 0 : index
    %c0_12 = arith.constant 0 : index
    %64 = vector.load %arg6[%c0_11, %c0_12] : memref<384x128xf32, #tpu.memory_space<vmem>>, vector<384x128xf32>
    %cst_13 = arith.constant dense<0.000000e+00> : vector<16x128xf32>
    %65 = tpu.matmul %63, %64, %cst_13 {dimension_numbers = #tpu.dot_dimension_numbers<[1], [0], [0], [1], [0, 0, 1, 1], [], []>} : vector<16x384xf32>, vector<384x128xf32>, vector<16x128xf32> -> vector<16x128xf32>
    %c0_14 = arith.constant 0 : index
    %c0_15 = arith.constant 0 : index
    %66 = vector.load %arg7[%c0_14, %c0_15] : memref<1x128xf32, #tpu.memory_space<vmem>>, vector<1x128xf32>
    %67 = vector.broadcast %66 : vector<1x128xf32> to vector<16x128xf32>
    %68 = arith.addf %65, %67 : vector<16x128xf32>
    %cst_16 = arith.constant 0.000000e+00 : f32
    %69 = vector.broadcast %cst_16 : f32 to vector<16x128xf32>
    %70 = arith.maximumf %68, %69 : vector<16x128xf32>
    %c0_17 = arith.constant 0 : index
    %c0_18 = arith.constant 0 : index
    %c0_19 = arith.constant 0 : index
    %71 = vector.load %arg8[%c0_17, %c0_18, %c0_19] : memref<1x16x128xf32, #tpu.memory_space<vmem>>, vector<1x16x128xf32>
    %72 = vector.shape_cast %71 : vector<1x16x128xf32> to vector<16x128xf32>
    %73 = vector.shape_cast %70 : vector<16x128xf32> to vector<1x16x128xf32>
    tpu.vector_store %arg8[%c0_17, %c0_18, %c0_19], %73 {strides = array<i32>} : memref<1x16x128xf32, #tpu.memory_space<vmem>>, vector<1x16x128xf32>,
    return
  }
  func.func @transform_0(%arg0: i32) -> (i32, i32, i32) {
    %c0_i32 = arith.constant 0 : i32
    %c0_i32_0 = arith.constant 0 : i32
    %c0_i32_1 = arith.constant 0 : i32
    return %arg0, %c0_i32, %c0_i32_0 : i32, i32, i32
  }
  func.func @transform_1(%arg0: i32) -> (i32, i32) {
    %c0_i32 = arith.constant 0 : i32
    %c0_i32_0 = arith.constant 0 : i32
    %c0_i32_1 = arith.constant 0 : i32
    return %c0_i32, %c0_i32_0 : i32, i32
  }
  func.func @transform_2(%arg0: i32) -> (i32, i32) {
    %c0_i32 = arith.constant 0 : i32
    %c0_i32_0 = arith.constant 0 : i32
    %c0_i32_1 = arith.constant 0 : i32
    return %c0_i32, %c0_i32_0 : i32, i32
  }
  func.func @transform_3(%arg0: i32) -> (i32, i32) {
    %c0_i32 = arith.constant 0 : i32
    %c0_i32_0 = arith.constant 0 : i32
    %c0_i32_1 = arith.constant 0 : i32
    return %c0_i32, %c0_i32_0 : i32, i32
  }
  func.func @transform_4(%arg0: i32) -> (i32, i32) {
    %c0_i32 = arith.constant 0 : i32
    %c0_i32_0 = arith.constant 0 : i32
    %c0_i32_1 = arith.constant 0 : i32
    return %c0_i32, %c0_i32_0 : i32, i32
  }
  func.func @transform_5(%arg0: i32) -> (i32, i32) {
    %c0_i32 = arith.constant 0 : i32
    %c0_i32_0 = arith.constant 0 : i32
    %c0_i32_1 = arith.constant 0 : i32
    return %c0_i32, %c0_i32_0 : i32, i32
  }
  func.func @transform_6(%arg0: i32) -> (i32, i32) {
    %c0_i32 = arith.constant 0 : i32
    %c0_i32_0 = arith.constant 0 : i32
    %c0_i32_1 = arith.constant 0 : i32
    return %c0_i32, %c0_i32_0 : i32, i32
  }
  func.func @transform_7(%arg0: i32) -> (i32, i32, i32) {
    %c0_i32 = arith.constant 0 : i32
    %c0_i32_0 = arith.constant 0 : i32
    %c0_i32_1 = arith.constant 0 : i32
    return %arg0, %c0_i32, %c0_i32_0 : i32, i32, i32
  }
}

</mosaic_0001>

<llo_original>
// kernel: sstgc_forward.1
$region0: #{sstgc_forward.1}
  #allocation0 [shape = 'u32[]', space=smem, size = 0x4, offset = 0x4, fixed_abs, tag = 'smem constant byte address 0x4 - core index']
  #allocation1 [shape = 'u32[144,128]{1,0:T(1,128)}', space=vmem, size = 0x12000, scoped, tag = 'internal scratch']
  %s0 = inlined_call_operand.vmem [shape: f32[2,20,74], index: 0, kind: input, shape index: {}]
  %s1 = inlined_call_operand.vmem [shape: f32[9,72], index: 1, kind: input, shape index: {}]
  %s2 = inlined_call_operand.vmem [shape: f32[72,128], index: 2, kind: input, shape index: {}]
  %s3 = inlined_call_operand.vmem [shape: f32[1,128], index: 3, kind: input, shape index: {}]
  %s4 = inlined_call_operand.vmem [shape: f32[18,1], index: 4, kind: input, shape index: {}]
  %s5 = inlined_call_operand.vmem [shape: f32[384,128], index: 5, kind: input, shape index: {}]
  %s6 = inlined_call_operand.vmem [shape: f32[1,128], index: 6, kind: input, shape index: {}]
  %s7 = inlined_call_operand.vmem [shape: f32[2,16,128], index: 7, kind: output, shape index: {}]
  %s8 = sld [smem:[#allocation0]]
  $region61: #{sstgc_forward.1} parent=0
    _
  %s10 = ssub.s32 1, %s8
  %s11 = scalar_select 0, %s10, %s8
  loop: start=0, step=1, limit=4
  $region2: #{sstgc_forward.1} parent=0 // loop_pre_header
    _
  $region3: #{sstgc_forward.1} parent=0 // loop_header
    %s13 = sphi 0, %s17
    %p14 = scmp.ge.s32.totalorder %s13, 4
    %s23 = sphi 0, %s25
    %s26 = sphi 0, %s23
    %s27 = sphi 0, %s26
    %s43 = sphi 0, %s27
    %s47 = sphi 0, %s47
    %s49 = sphi 0, %s47
    %s50 = sphi 0, %s49
    %s64 = sphi 0, %s50
    %s68 = sphi 0, %s68
    %s70 = sphi 0, %s68
    %s71 = sphi 0, %s70
    %s85 = sphi 0, %s71
    %s89 = sphi 0, %s89
    %s91 = sphi 0, %s89
    %s92 = sphi 0, %s91
    %s106 = sphi 0, %s92
    %s110 = sphi 0, %s110
    %s112 = sphi 0, %s110
    %s113 = sphi 0, %s112
    %s127 = sphi 0, %s113
    %s131 = sphi 0, %s131
    %s133 = sphi 0, %s131
    %s134 = sphi 0, %s133
    %s148 = sphi 0, %s134
    %s152 = sphi 0, %s152
    %s154 = sphi 0, %s152
    %s155 = sphi 0, %s154
    %s169 = sphi 0, %s155
    %s175 = sphi 0, %s177
    %s178 = sphi 0, %s175
    %s179 = sphi 0, %s178
    %s195 = sphi 0, %s179
  $region4: #{sstgc_forward.1} parent=0 // loop_header_branch
    %16 = sbr.rel (%p14) target = $region8
  $region5: #{sstgc_forward.1} parent=0 // loop_body
    %s18 = ssub.s32 %s13, 1
    %s19 = ssub.s32 %s13, 2
    %s20 = sadd.s32 %s13, 1
    %s21 = ssub.s32 %s13, %s20
    %p22 = scmp.eq.s32.totalorder %s21, 0
    %s24 = sadd.s32 %s23, 1
    %s25 = scalar_select %p22, %s23, %s24
    %p28 = pneg %p22
    %p29 = scmp.eq.s32.totalorder %s13, 1
    %p30 = por %p28, %p29
    %p31 = scmp.ne.s32.totalorder %s23, %s26
    %p32 = scmp.eq.s32.totalorder %s13, 0
    %p33 = por %p31, %p32
    %p34 = scmp.ne.s32.totalorder %s23, %s26
    %p35 = scmp.eq.s32.totalorder %s18, 1
    %p36 = por %p34, %p35
    %p37 = scmp.ne.s32.totalorder %s26, %s27
    %p38 = scmp.eq.s32.totalorder %s18, 0
    %p39 = por %p37, %p38
    %p40 = scmp.ne.s32.totalorder %s26, %s27
    %p41 = scmp.eq.s32.totalorder %s19, 1
    %p42 = por %p40, %p41
    %p44 = scmp.ne.s32.totalorder %s27, %s43
    %p45 = scmp.eq.s32.totalorder %s19, 0
    %p46 = por %p44, %p45
    %s48 = sadd.s32 %s47, 1
    %p51 = scmp.eq.s32.totalorder %s13, 1
    %p52 = scmp.ne.s32.totalorder %s47, %s49
    %p53 = scmp.eq.s32.totalorder %s13, 0
    %p54 = por %p52, %p53
    %p55 = scmp.ne.s32.totalorder %s47, %s49
    %p56 = scmp.eq.s32.totalorder %s18, 1
    %p57 = por %p55, %p56
    %p58 = scmp.ne.s32.totalorder %s49, %s50
    %p59 = scmp.eq.s32.totalorder %s18, 0
    %p60 = por %p58, %p59
    %p61 = scmp.ne.s32.totalorder %s49, %s50
    %p62 = scmp.eq.s32.totalorder %s19, 1
    %p63 = por %p61, %p62
    %p65 = scmp.ne.s32.totalorder %s50, %s64
    %p66 = scmp.eq.s32.totalorder %s19, 0
    %p67 = por %p65, %p66
    %s69 = sadd.s32 %s68, 1
    %p72 = scmp.eq.s32.totalorder %s13, 1
    %p73 = scmp.ne.s32.totalorder %s68, %s70
    %p74 = scmp.eq.s32.totalorder %s13, 0
    %p75 = por %p73, %p74
    %p76 = scmp.ne.s32.totalorder %s68, %s70
    %p77 = scmp.eq.s32.totalorder %s18, 1
    %p78 = por %p76, %p77
    %p79 = scmp.ne.s32.totalorder %s70, %s71
    %p80 = scmp.eq.s32.totalorder %s18, 0
    %p81 = por %p79, %p80
    %p82 = scmp.ne.s32.totalorder %s70, %s71
    %p83 = scmp.eq.s32.totalorder %s19, 1
    %p84 = por %p82, %p83
    %p86 = scmp.ne.s32.totalorder %s71, %s85
    %p87 = scmp.eq.s32.totalorder %s19, 0
    %p88 = por %p86, %p87
    %s90 = sadd.s32 %s89, 1
    %p93 = scmp.eq.s32.totalorder %s13, 1
    %p94 = scmp.ne.s32.totalorder %s89, %s91
    %p95 = scmp.eq.s32.totalorder %s13, 0
    %p96 = por %p94, %p95
    %p97 = scmp.ne.s32.totalorder %s89, %s91
    %p98 = scmp.eq.s32.totalorder %s18, 1
    %p99 = por %p97, %p98
    %p100 = scmp.ne.s32.totalorder %s91, %s92
    %p101 = scmp.eq.s32.totalorder %s18, 0
    %p102 = por %p100, %p101
    %p103 = scmp.ne.s32.totalorder %s91, %s92
    %p104 = scmp.eq.s32.totalorder %s19, 1
    %p105 = por %p103, %p104
    %p107 = scmp.ne.s32.totalorder %s92, %s106
    %p108 = scmp.eq.s32.totalorder %s19, 0
    %p109 = por %p107, %p108
    %s111 = sadd.s32 %s110, 1
    %p114 = scmp.eq.s32.totalorder %s13, 1
    %p115 = scmp.ne.s32.totalorder %s110, %s112
    %p116 = scmp.eq.s32.totalorder %s13, 0
    %p117 = por %p115, %p116
    %p118 = scmp.ne.s32.totalorder %s110, %s112
    %p119 = scmp.eq.s32.totalorder %s18, 1
    %p120 = por %p118, %p119
    %p121 = scmp.ne.s32.totalorder %s112, %s113
    %p122 = scmp.eq.s32.totalorder %s18, 0
    %p123 = por %p121, %p122
    %p124 = scmp.ne.s32.totalorder %s112, %s113
    %p125 = scmp.eq.s32.totalorder %s19, 1
    %p126 = por %p124, %p125
    %p128 = scmp.ne.s32.totalorder %s113, %s127
    %p129 = scmp.eq.s32.totalorder %s19, 0
    %p130 = por %p128, %p129
    %s132 = sadd.s32 %s131, 1
    %p135 = scmp.eq.s32.totalorder %s13, 1
    %p136 = scmp.ne.s32.totalorder %s131, %s133
    %p137 = scmp.eq.s32.totalorder %s13, 0
    %p138 = por %p136, %p137
    %p139 = scmp.ne.s32.totalorder %s131, %s133
    %p140 = scmp.eq.s32.totalorder %s18, 1
    %p141 = por %p139, %p140
    %p142 = scmp.ne.s32.totalorder %s133, %s134
    %p143 = scmp.eq.s32.totalorder %s18, 0
    %p144 = por %p142, %p143
    %p145 = scmp.ne.s32.totalorder %s133, %s134
    %p146 = scmp.eq.s32.totalorder %s19, 1
    %p147 = por %p145, %p146
    %p149 = scmp.ne.s32.totalorder %s134, %s148
    %p150 = scmp.eq.s32.totalorder %s19, 0
    %p151 = por %p149, %p150
    %s153 = sadd.s32 %s152, 1
    %p156 = scmp.eq.s32.totalorder %s13, 1
    %p157 = scmp.ne.s32.totalorder %s152, %s154
    %p158 = scmp.eq.s32.totalorder %s13, 0
    %p159 = por %p157, %p158
    %p160 = scmp.ne.s32.totalorder %s152, %s154
    %p161 = scmp.eq.s32.totalorder %s18, 1
    %p162 = por %p160, %p161
    %p163 = scmp.ne.s32.totalorder %s154, %s155
    %p164 = scmp.eq.s32.totalorder %s18, 0
    %p165 = por %p163, %p164
    %p166 = scmp.ne.s32.totalorder %s154, %s155
    %p167 = scmp.eq.s32.totalorder %s19, 1
    %p168 = por %p166, %p167
    %p170 = scmp.ne.s32.totalorder %s155, %s169
    %p171 = scmp.eq.s32.totalorder %s19, 0
    %p172 = por %p170, %p171
    %s173 = ssub.s32 %s13, %s20
    %p174 = scmp.eq.s32.totalorder %s173, 0
    %s176 = sadd.s32 %s175, 1
    %s177 = scalar_select %p174, %s175, %s176
    %p180 = pneg %p174
    %p181 = scmp.eq.s32.totalorder %s13, 1
    %p182 = por %p180, %p181
    %p183 = scmp.ne.s32.totalorder %s175, %s178
    %p184 = scmp.eq.s32.totalorder %s13, 0
    %p185 = por %p183, %p184
    %p186 = scmp.ne.s32.totalorder %s175, %s178
    %p187 = scmp.eq.s32.totalorder %s18, 1
    %p188 = por %p186, %p187
    %p189 = scmp.ne.s32.totalorder %s178, %s179
    %p190 = scmp.eq.s32.totalorder %s18, 0
    %p191 = por %p189, %p190
    %p192 = scmp.ne.s32.totalorder %s178, %s179
    %p193 = scmp.eq.s32.totalorder %s19, 1
    %p194 = por %p192, %p193
    %p196 = scmp.ne.s32.totalorder %s179, %s195
    %p197 = scmp.eq.s32.totalorder %s19, 0
    %p198 = por %p196, %p197
    %p199 = scmp.le.s32.totalorder 1, %s13
    %p200 = scmp.lt.s32.totalorder %s13, 3
    %p201 = pnand %p199, %p200
    %p202 = pneg %p201
    // Predicated region
    $region9: #{sstgc_forward.1} parent=5 // pred_check
      _
    $region10: #{sstgc_forward.1} parent=5 // pred_check_branch
      %204 = sbr.rel (%p201) target = $region12
    $region11: #{sstgc_forward.1} parent=5 // pred_region
      %s205 = ssub.s32 %s13, 1
      // Predicated region
      $region13: #{sstgc_forward.1} parent=11 // pred_check
        %p206 = pneg %p60
      $region14: #{sstgc_forward.1} parent=11 // pred_check_branch
        %208 = sbr.rel (%p206) target = $region16
      $region15: #{sstgc_forward.1} parent=11 // pred_region
        _
      $region16: #{sstgc_forward.1} parent=11 // pred_fallthru
        _
      // Predicated region
      $region17: #{sstgc_forward.1} parent=11 // pred_check
        %p209 = pneg %p81
      $region18: #{sstgc_forward.1} parent=11 // pred_check_branch
        %211 = sbr.rel (%p209) target = $region20
      $region19: #{sstgc_forward.1} parent=11 // pred_region
        _
      $region20: #{sstgc_forward.1} parent=11 // pred_fallthru
        _
      // Predicated region
      $region21: #{sstgc_forward.1} parent=11 // pred_check
        %p212 = pneg %p102
      $region22: #{sstgc_forward.1} parent=11 // pred_check_branch
        %214 = sbr.rel (%p212) target = $region24
      $region23: #{sstgc_forward.1} parent=11 // pred_region
        _
      $region24: #{sstgc_forward.1} parent=11 // pred_fallthru
        _
      // Predicated region
      $region25: #{sstgc_forward.1} parent=11 // pred_check
        %p215 = pneg %p123
      $region26: #{sstgc_forward.1} parent=11 // pred_check_branch
        %217 = sbr.rel (%p215) target = $region28
      $region27: #{sstgc_forward.1} parent=11 // pred_region
        _
      $region28: #{sstgc_forward.1} parent=11 // pred_fallthru
        _
      // Predicated region
      $region29: #{sstgc_forward.1} parent=11 // pred_check
        %p218 = pneg %p144
      $region30: #{sstgc_forward.1} parent=11 // pred_check_branch
        %220 = sbr.rel (%p218) target = $region32
      $region31: #{sstgc_forward.1} parent=11 // pred_region
        _
      $region32: #{sstgc_forward.1} parent=11 // pred_fallthru
        _
      // Predicated region
      $region33: #{sstgc_forward.1} parent=11 // pred_check
        %p221 = pneg %p165
      $region34: #{sstgc_forward.1} parent=11 // pred_check_branch
        %223 = sbr.rel (%p221) target = $region36
      $region35: #{sstgc_forward.1} parent=11 // pred_region
        _
      $region36: #{sstgc_forward.1} parent=11 // pred_fallthru
        _
    $region12: #{sstgc_forward.1} parent=5 // pred_fallthru
      _
    %p224 = scmp.lt.s32.totalorder %s13, 2
    // Predicated region
    $region37: #{sstgc_forward.1} parent=5 // pred_check
      %p225 = pneg %p224
    $region38: #{sstgc_forward.1} parent=5 // pred_check_branch
      %227 = sbr.rel (%p225) target = $region40
    $region39: #{sstgc_forward.1} parent=5 // pred_region
      // Predicated region
      $region41: #{sstgc_forward.1} parent=39 // pred_check
        %p228 = pneg %p33
      $region42: #{sstgc_forward.1} parent=39 // pred_check_branch
        %230 = sbr.rel (%p228) target = $region44
      $region43: #{sstgc_forward.1} parent=39 // pred_region
        %p231 = scmp.lt.s32.totalorder %s13, 1
        %s232 = scalar_select %p231, %s13, 1
        %s233 = smul.addr %s232, 3
        %s234 = smul.addr %s233, 8
        %s235 = scalar_lea.vmem %s0, %s234
      $region44: #{sstgc_forward.1} parent=39 // pred_fallthru
        _
    $region40: #{sstgc_forward.1} parent=5 // pred_fallthru
      _
    %p236 = scmp.le.s32.totalorder 1, %s13
    %p237 = scmp.lt.s32.totalorder %s13, 3
    %p238 = pnand %p236, %p237
    %p239 = pneg %p238
    // Predicated region
    $region45: #{sstgc_forward.1} parent=5 // pred_check
      _
    $region46: #{sstgc_forward.1} parent=5 // pred_check_branch
      %241 = sbr.rel (%p238) target = $region48
    $region47: #{sstgc_forward.1} parent=5 // pred_region
      %s242 = ssub.s32 %s13, 1
      %p243 = scmp.lt.s32.totalorder %s18, 1
      %s244 = scalar_select %p243, %s18, 1
      %s245 = smul.addr %s244, 3
      %s246 = smul.addr %s245, 8
      %s247 = scalar_lea.vmem %s0, %s246
      %p248 = pneg %p39
      %p249 = pneg %p36
      %p250 = pneg %p60
      %p251 = pneg %p57
      %p252 = pneg %p81
      %p253 = pneg %p78
      %p254 = pneg %p102
      %p255 = pneg %p99
      %p256 = pneg %p123
      %p257 = pneg %p120
      %p258 = pneg %p144
      %p259 = pneg %p141
      %p260 = pneg %p165
      %p261 = pneg %p162
      %p262 = pneg %p191
      %p263 = pneg %p188
      %p264 = scmp.lt.s32.totalorder %s18, 1
      %s265 = scalar_select %p264, %s18, 1
      %s266 = smul.addr %s265, 2
      %s267 = smul.addr %s266, 8
      %s268 = scalar_lea.vmem %s7, %s267
      %p269 = scmp.lt.s32.totalorder %s18, 1
      %s270 = scalar_select %p269, %s18, 1
      %s271 = smul.addr %s270, 3
      %s272 = smul.addr %s271, 8
      %s273 = scalar_lea.vmem %s0, %s272
      %p274 = scmp.lt.s32.totalorder %s18, 1
      %s275 = scalar_select %p274, %s18, 1
      %s276 = smul.addr %s275, 2
      %s277 = smul.addr %s276, 8
      %s278 = scalar_lea.vmem %s7, %s277
      %v279 = vld [vmem:[%s1] sm:$0xff]
      %v280 = vld [vmem:[%s1 + $0x8] sm:$0x1]
      %v281 = vld [vmem:[%s273] sm:$0xff]
      %v282 = vld [vmem:[%s273 + $0x8] sm:$0xff]
      %v283 = vld [vmem:[%s273 + $0x10] sm:$0xf]
      %v284 = vlaneseq
      %v285 = vshrl.u32 %v284, 7
      %v286 = vsub.s32 0, %v285
      %v287 = vrot.slane %v279, %v286
      %v288 = vmul.f32 %v287, %v281
      %v289 = vmul.f32 %v287, %v282
      %v290 = vmul.f32 %v287, %v283
      %v291 = vlaneseq
      %v292 = vshrl.u32 %v291, 7
      %v293 = vsub.s32 1, %v292
      %v294 = vrot.slane %v279, %v293
      %298 = vrot.lane.b32.xlu0 %v281, 127
      %v299 = vpop.permute.xlu0 %298
      %300 = vrot.lane.b32.xlu0 %v282, 127
      %v301 = vpop.permute.xlu0 %300
      %302 = vrot.lane.b32.xlu0 %v283, 127
      %v303 = vpop.permute.xlu0 %302
      %v307 = vmul.f32 %v294, %v299
      %v308 = vmul.f32 %v294, %v301
      %v309 = vmul.f32 %v294, %v303
      %v310 = vadd.f32 %v288, %v307
      %v311 = vadd.f32 %v289, %v308
      %v312 = vadd.f32 %v290, %v309
      %v313 = vlaneseq
      %v314 = vshrl.u32 %v313, 7
      %v315 = vsub.s32 2, %v314
      %v316 = vrot.slane %v279, %v315
      %317 = vrot.lane.b32.xlu0 %v281, 126
      %v318 = vpop.permute.xlu0 %317
      %319 = vrot.lane.b32.xlu0 %v282, 126
      %v320 = vpop.permute.xlu0 %319
      %321 = vrot.lane.b32.xlu0 %v283, 126
      %v322 = vpop.permute.xlu0 %321
      %v326 = vmul.f32 %v316, %v318
      %v327 = vmul.f32 %v316, %v320
      %v328 = vmul.f32 %v316, %v322
      %v329 = vadd.f32 %v310, %v326
      %v330 = vadd.f32 %v311, %v327
      %v331 = vadd.f32 %v312, %v328
      %v332 = vlaneseq
      %v333 = vshrl.u32 %v332, 7
      %v334 = vsub.s32 3, %v333
      %v335 = vrot.slane %v279, %v334
      %v336 = vmul.f32 %v335, %v281
      %v337 = vmul.f32 %v335, %v282
      %v338 = vmul.f32 %v335, %v283
      %v339 = vlaneseq
      %v340 = vshrl.u32 %v339, 7
      %v341 = vsub.s32 4, %v340
      %v342 = vrot.slane %v279, %v341
      %vm343 = vcmask 1046528
      %v344 = vrot.slane %v281, 1
      %v345 = vrot.slane %v282, 1
      %v346 = vsel %vm343, %v344, %v345
      %v347 = vrot.slane %v283, 1
      %v348 = vsel %vm343, %v345, %v347
      %349 = vrot.lane.b32.xlu0 %v346, 127
      %v350 = vpop.permute.xlu0 %349
      %351 = vrot.lane.b32.xlu0 %v348, 127
      %v352 = vpop.permute.xlu0 %351
      %353 = vrot.lane.b32.xlu0 %v347, 127
      %v354 = vpop.permute.xlu0 %353
      %v358 = vmul.f32 %v342, %v350
      %v359 = vmul.f32 %v342, %v352
      %v360 = vmul.f32 %v342, %v354
      %vm364 = vcmask 1040384
      %v365 = vrot.slane %v358, 7
      %v366 = vrot.slane %v359, 7
      %v367 = vsel %vm364, %v365, %v366
      %v368 = vrot.slane %v360, 7
      %v369 = vsel %vm364, %v366, %v368
      %v373 = vadd.f32 %v336, %v365
      %v374 = vadd.f32 %v337, %v367
      %v375 = vadd.f32 %v338, %v369
      %v376 = vlaneseq
      %v377 = vshrl.u32 %v376, 7
      %v378 = vsub.s32 5, %v377
      %v379 = vrot.slane %v279, %v378
      %380 = vrot.lane.b32.xlu0 %v346, 126
      %v381 = vpop.permute.xlu0 %380
      %382 = vrot.lane.b32.xlu0 %v348, 126
      %v383 = vpop.permute.xlu0 %382
      %384 = vrot.lane.b32.xlu0 %v347, 126
      %v385 = vpop.permute.xlu0 %384
      %v389 = vmul.f32 %v379, %v381
      %v390 = vmul.f32 %v379, %v383
      %v391 = vmul.f32 %v379, %v385
      %v395 = vrot.slane %v389, 7
      %v396 = vrot.slane %v390, 7
      %v397 = vsel %vm364, %v395, %v396
      %v398 = vrot.slane %v391, 7
      %v399 = vsel %vm364, %v396, %v398
      %v403 = vadd.f32 %v373, %v395
      %v404 = vadd.f32 %v374, %v397
      %v405 = vadd.f32 %v375, %v399
      %v406 = vlaneseq
      %v407 = vshrl.u32 %v406, 7
      %v408 = vsub.s32 6, %v407
      %v409 = vrot.slane %v279, %v408
      %v410 = vmul.f32 %v409, %v281
      %v411 = vmul.f32 %v409, %v282
      %v412 = vmul.f32 %v409, %v283
      %v413 = vlaneseq
      %v414 = vshrl.u32 %v413, 7
      %v415 = vsub.s32 7, %v414
      %v416 = vrot.slane %v279, %v415
      %vm417 = vcmask 1045504
      %v418 = vrot.slane %v281, 2
      %v419 = vrot.slane %v282, 2
      %v420 = vsel %vm417, %v418, %v419
      %v421 = vrot.slane %v283, 2
      %v422 = vsel %vm417, %v419, %v421
      %423 = vrot.lane.b32.xlu0 %v420, 127
      %v424 = vpop.permute.xlu0 %423
      %425 = vrot.lane.b32.xlu0 %v422, 127
      %v426 = vpop.permute.xlu0 %425
      %427 = vrot.lane.b32.xlu0 %v421, 127
      %v428 = vpop.permute.xlu0 %427
      %v432 = vmul.f32 %v416, %v424
      %v433 = vmul.f32 %v416, %v426
      %v434 = vmul.f32 %v416, %v428
      %vm438 = vcmask 1041408
      %v439 = vrot.slane %v432, 6
      %v440 = vrot.slane %v433, 6
      %v441 = vsel %vm438, %v439, %v440
      %v442 = vrot.slane %v434, 6
      %v443 = vsel %vm438, %v440, %v442
      %v447 = vadd.f32 %v410, %v439
      %v448 = vadd.f32 %v411, %v441
      %v449 = vadd.f32 %v412, %v443
      %v450 = vlaneseq
      %v451 = vshrl.u32 %v450, 7
      %v452 = vsub.s32 0, %v451
      %v453 = vrot.slane %v280, %v452
      %454 = vrot.lane.b32.xlu0 %v420, 126
      %v455 = vpop.permute.xlu0 %454
      %456 = vrot.lane.b32.xlu0 %v422, 126
      %v457 = vpop.permute.xlu0 %456
      %458 = vrot.lane.b32.xlu0 %v421, 126
      %v459 = vpop.permute.xlu0 %458
      %v463 = vmul.f32 %v453, %v455
      %v464 = vmul.f32 %v453, %v457
      %v465 = vmul.f32 %v453, %v459
      %v469 = vrot.slane %v463, 6
      %v470 = vrot.slane %v464, 6
      %v471 = vsel %vm438, %v469, %v470
      %v472 = vrot.slane %v465, 6
      %v473 = vsel %vm438, %v470, %v472
      %v477 = vadd.f32 %v447, %v469
      %v478 = vadd.f32 %v448, %v471
      %v479 = vadd.f32 %v449, %v473
      %v483 = vrot.slane %v403, 1
      %v484 = vrot.slane %v404, 1
      %v485 = vsel %vm343, %v483, %v484
      %v486 = vrot.slane %v405, 1
      %v487 = vsel %vm343, %v484, %v486
      %v491 = vadd.f32 %v329, %v485
      %v492 = vadd.f32 %v330, %v487
      %v493 = vadd.f32 %v331, %v486
      %v497 = vrot.slane %v477, 2
      %v498 = vrot.slane %v478, 2
      %v499 = vsel %vm417, %v497, %v498
      %v500 = vrot.slane %v479, 2
      %v501 = vsel %vm417, %v498, %v500
      %v505 = vadd.f32 %v491, %v499
      %v506 = vadd.f32 %v492, %v501
      %v507 = vadd.f32 %v493, %v500
      %v508 = vld [vmem:[%s2] sm:$0xff]
      %v509 = vld [vmem:[%s2 + $0x8] sm:$0xff]
      %v510 = vld [vmem:[%s2 + $0x10] sm:$0xff]
      %v511 = vld [vmem:[%s2 + $0x18] sm:$0xff]
      %v512 = vld [vmem:[%s2 + $0x20] sm:$0xff]
      %v513 = vld [vmem:[%s2 + $0x28] sm:$0xff]
      %v514 = vld [vmem:[%s2 + $0x30] sm:$0xff]
      %v515 = vld [vmem:[%s2 + $0x38] sm:$0xff]
      %v516 = vld [vmem:[%s2 + $0x40] sm:$0xff]
      %v517 = vld [vmem:[%s3] sm:$0x1]
      %v519 = vlaneseq
      %v520 = vshrl.u32 %v519, 7
      %v521 = vsub.s32 0, %v520
      %v522 = vrot.slane %v517, %v521
      %vm524 = vcmask 588800
      %v526 = vsel %vm524, %v505, 0
      %v529 = vsel %vm524, %v506, 0
      %v532 = vsel %vm524, %v507, 0
      %534 = vmatprep.subr.mxu0 0.0
      %535 = vmatpush1.msra.mxu0 %v508
      %536 = vmatprep.subr.mxu0 0.0
      %537 = vmatpush1.msra.mxu0 %v509
      %538 = vmatprep.subr.mxu0 0.0
      %539 = vmatpush1.msra.mxu0 %v510
      %540 = vmatprep.subr.mxu0 0.0
      %541 = vmatpush1.msra.mxu0 %v511
      %542 = vmatprep.subr.mxu0 0.0
      %543 = vmatpush1.msra.mxu0 %v512
      %544 = vmatprep.subr.mxu0 0.0
      %545 = vmatpush1.msra.mxu0 %v513
      %546 = vmatprep.subr.mxu0 0.0
      %547 = vmatpush1.msra.mxu0 %v514
      %548 = vmatprep.subr.mxu0 0.0
      %549 = vmatpush1.msra.mxu0 %v515
      %550 = vmatprep.subr.mxu0 0.0
      %551 = vmatpush1.msra.mxu0 %v516
      %552 = vmatprep.subr.mxu0 0.0
      %553 = vmatpush1.msra.mxu0 0.0
      %554 = vmatprep.subr.mxu0 0.0
      %555 = vmatpush1.msra.mxu0 0.0
      %556 = vmatprep.subr.mxu0 0.0
      %557 = vmatpush1.msra.mxu0 0.0
      %558 = vmatprep.subr.mxu0 0.0
      %559 = vmatpush1.msra.mxu0 0.0
      %560 = vmatprep.subr.mxu0 0.0
      %561 = vmatpush1.msra.mxu0 0.0
      %562 = vmatprep.subr.mxu0 0.0
      %563 = vmatpush1.msra.mxu0 0.0
      %564 = vmatprep.subr.mxu0 0.0
      %565 = vmatpush1.msra.mxu0 0.0
      %566 = vmatprep.subr.mxu0 0.0
      %567 = vmatpush1.msra.mxu0 0.0
      %568 = vmatprep.subr.mxu0 0.0
      %569 = vmatpush1.msra.mxu0 0.0
      %570 = vmatprep.subr.mxu0 0.0
      %571 = vmatpush1.msra.mxu0 0.0
      %572 = vmatprep.subr.mxu0 0.0
      %573 = vmatpush1.msra.mxu0 0.0
      %574 = vmatprep.subr.mxu0 0.0
      %575 = vmatpush1.msra.mxu0 0.0
      %576 = vmatprep.subr.mxu0 0.0
      %577 = vmatpush1.msra.mxu0 0.0
      %578 = vmatprep.subr.mxu0 0.0
      %579 = vmatpush1.msra.mxu0 0.0
      %580 = vmatprep.subr.mxu0 0.0
      %581 = vmatpush1.msra.mxu0 0.0
      %582 = vmatprep.subr.mxu0 0.0
      %583 = vmatpush1.msra.mxu0 0.0
      %584 = vmatprep.subr.mxu0 0.0
      %585 = vmatpush1.msra.mxu0 0.0
      %586 = vmatprep.subr.mxu0 0.0
      %587 = vmatpush1.msra.mxu0 0.0
      %588 = vmatprep.subr.mxu0 0.0
      %589 = vmatpush1.msra.mxu0 0.0
      %590 = vmatprep.subr.mxu0 0.0
      %591 = vmatpush1.msra.mxu0 0.0
      %592 = vmatprep.subr.mxu0 0.0
      %593 = vmatpush1.msra.mxu0 0.0
      %594 = vmatprep.subr.mxu0 0.0
      %595 = vmatpush1.msra.mxu0 0.0
      %596 = vmatprep.subr.mxu0 0.0
      %597 = vmatpush1.msra.mxu0 0.0
      %598 = vmatprep.mubr.f32.mxu0 0.0
      %599 = vmatmul.mubr.f32.gmra.mrb[0].mxu0 %v526
      %v600 = vpop.f32.mrb[0].mxu0
      %v601 = vadd.f32 %v522, %v600
      %v602 = vpop.f32.mrb[0].mxu0
      %603 = vmatprep.mubr.f32.mxu0 0.0
      %604 = vmatmul.mubr.f32.gmra.mrb[0].mxu0 %v529
      %v605 = vpop.f32.mrb[0].mxu0
      %v606 = vadd.f32 %v522, %v605
      %v607 = vpop.f32.mrb[0].mxu0
      %608 = vmatprep.mubr.f32.mxu0 0.0
      %609 = vmatmul.mubr.f32.gmra.mrb[0].mxu0 %v532
      %v610 = vpop.f32.mrb[0].mxu0
      %v611 = vadd.f32 %v522, %v610
      %v612 = vpop.f32.mrb[0].mxu0
      %613 = vdwg.mxu0
      %v614 = vmax.f32 %v601, 0.0
      %v615 = vmax.f32 %v606, 0.0
      %v616 = vmax.f32 %v611, 0.0
      %v617 = vld [vmem:[%s4] sm:$0xff]
      %v618 = vld [vmem:[%s4 + $0x8] sm:$0xff]
      %v619 = vld [vmem:[%s4 + $0x10] sm:$0x3]
      %621 = vset.pattern.permute.xlu0 0
      %622 = vperm.xlu0 %621, %v617
      %v623 = vpop.permute.xlu0 %622
      %626 = vset.pattern.permute.xlu0 0
      %627 = vperm.xlu0 %626, %v618
      %v628 = vpop.permute.xlu0 %627
      %631 = vset.pattern.permute.xlu0 0
      %632 = vperm.xlu0 %631, %v619
      %v633 = vpop.permute.xlu0 %632
      %v635 = vmul.f32 %v614, %v623
      %v636 = vmul.f32 %v615, %v628
      %v637 = vmul.f32 %v616, %v633
      %v641 = vrot.slane %v635, 1
      %v642 = vrot.slane %v636, 1
      %v643 = vsel %vm343, %v641, %v642
      %v644 = vrot.slane %v637, 1
      %v645 = vsel %vm343, %v642, %v644
      %v648 = vrot.slane %v635, 2
      %v649 = vrot.slane %v636, 2
      %v650 = vsel %vm417, %v648, %v649
      %v651 = vrot.slane %v637, 2
      %v652 = vsel %vm417, %v649, %v651
      %v655 = vld [vmem:[%s5] sm:$0xff]
      %v656 = vld [vmem:[%s5 + $0x8] sm:$0xff]
      %v657 = vld [vmem:[%s5 + $0x10] sm:$0xff]
      %v658 = vld [vmem:[%s5 + $0x18] sm:$0xff]
      %v659 = vld [vmem:[%s5 + $0x20] sm:$0xff]
      %v660 = vld [vmem:[%s5 + $0x28] sm:$0xff]
      %v661 = vld [vmem:[%s5 + $0x30] sm:$0xff]
      %v662 = vld [vmem:[%s5 + $0x38] sm:$0xff]
      %v663 = vld [vmem:[%s5 + $0x40] sm:$0xff]
      %v664 = vld [vmem:[%s5 + $0x48] sm:$0xff]
      %v665 = vld [vmem:[%s5 + $0x50] sm:$0xff]
      %v666 = vld [vmem:[%s5 + $0x58] sm:$0xff]
      %v667 = vld [vmem:[%s5 + $0x60] sm:$0xff]
      %v668 = vld [vmem:[%s5 + $0x68] sm:$0xff]
      %v669 = vld [vmem:[%s5 + $0x70] sm:$0xff]
      %v670 = vld [vmem:[%s5 + $0x78] sm:$0xff]
      %v671 = vld [vmem:[%s5 + $0x80] sm:$0xff]
      %v672 = vld [vmem:[%s5 + $0x88] sm:$0xff]
      %v673 = vld [vmem:[%s5 + $0x90] sm:$0xff]
      %v674 = vld [vmem:[%s5 + $0x98] sm:$0xff]
      %v675 = vld [vmem:[%s5 + $0xa0] sm:$0xff]
      %v676 = vld [vmem:[%s5 + $0xa8] sm:$0xff]
      %v677 = vld [vmem:[%s5 + $0xb0] sm:$0xff]
      %v678 = vld [vmem:[%s5 + $0xb8] sm:$0xff]
      %v679 = vld [vmem:[%s5 + $0xc0] sm:$0xff]
      %v680 = vld [vmem:[%s5 + $0xc8] sm:$0xff]
      %v681 = vld [vmem:[%s5 + $0xd0] sm:$0xff]
      %v682 = vld [vmem:[%s5 + $0xd8] sm:$0xff]
      %v683 = vld [vmem:[%s5 + $0xe0] sm:$0xff]
      %v684 = vld [vmem:[%s5 + $0xe8] sm:$0xff]
      %v685 = vld [vmem:[%s5 + $0xf0] sm:$0xff]
      %v686 = vld [vmem:[%s5 + $0xf8] sm:$0xff]
      %v687 = vld [vmem:[%s5 + $0x100] sm:$0xff]
      %v688 = vld [vmem:[%s5 + $0x108] sm:$0xff]
      %v689 = vld [vmem:[%s5 + $0x110] sm:$0xff]
      %v690 = vld [vmem:[%s5 + $0x118] sm:$0xff]
      %v691 = vld [vmem:[%s5 + $0x120] sm:$0xff]
      %v692 = vld [vmem:[%s5 + $0x128] sm:$0xff]
      %v693 = vld [vmem:[%s5 + $0x130] sm:$0xff]
      %v694 = vld [vmem:[%s5 + $0x138] sm:$0xff]
      %v695 = vld [vmem:[%s5 + $0x140] sm:$0xff]
      %v696 = vld [vmem:[%s5 + $0x148] sm:$0xff]
      %v697 = vld [vmem:[%s5 + $0x150] sm:$0xff]
      %v698 = vld [vmem:[%s5 + $0x158] sm:$0xff]
      %v699 = vld [vmem:[%s5 + $0x160] sm:$0xff]
      %v700 = vld [vmem:[%s5 + $0x168] sm:$0xff]
      %v701 = vld [vmem:[%s5 + $0x170] sm:$0xff]
      %v702 = vld [vmem:[%s5 + $0x178] sm:$0xff]
      %v703 = vld [vmem:[%s6] sm:$0x1]
      %v705 = vlaneseq
      %v706 = vshrl.u32 %v705, 7
      %v707 = vsub.s32 0, %v706
      %v708 = vrot.slane %v703, %v707
      %710 = vmatprep.subr.mxu0 0.0
      %711 = vmatpush1.msra.mxu0 %v655
      %712 = vmatprep.subr.mxu0 0.0
      %713 = vmatpush1.msra.mxu0 %v656
      %714 = vmatprep.subr.mxu0 0.0
      %715 = vmatpush1.msra.mxu0 %v657
      %716 = vmatprep.subr.mxu0 0.0
      %717 = vmatpush1.msra.mxu0 %v658
      %718 = vmatprep.subr.mxu0 0.0
      %719 = vmatpush1.msra.mxu0 %v659
      %720 = vmatprep.subr.mxu0 0.0
      %721 = vmatpush1.msra.mxu0 %v660
      %722 = vmatprep.subr.mxu0 0.0
      %723 = vmatpush1.msra.mxu0 %v661
      %724 = vmatprep.subr.mxu0 0.0
      %725 = vmatpush1.msra.mxu0 %v662
      %726 = vmatprep.subr.mxu0 0.0
      %727 = vmatpush1.msra.mxu0 %v663
      %728 = vmatprep.subr.mxu0 0.0
      %729 = vmatpush1.msra.mxu0 %v664
      %730 = vmatprep.subr.mxu0 0.0
      %731 = vmatpush1.msra.mxu0 %v665
      %732 = vmatprep.subr.mxu0 0.0
      %733 = vmatpush1.msra.mxu0 %v666
      %734 = vmatprep.subr.mxu0 0.0
      %735 = vmatpush1.msra.mxu0 %v667
      %736 = vmatprep.subr.mxu0 0.0
      %737 = vmatpush1.msra.mxu0 %v668
      %738 = vmatprep.subr.mxu0 0.0
      %739 = vmatpush1.msra.mxu0 %v669
      %740 = vmatprep.subr.mxu0 0.0
      %741 = vmatpush1.msra.mxu0 %v670
      %742 = vmatprep.subr.mxu0 0.0
      %743 = vmatpush1.msra.mxu0 %v671
      %744 = vmatprep.subr.mxu0 0.0
      %745 = vmatpush1.msra.mxu0 %v672
      %746 = vmatprep.subr.mxu0 0.0
      %747 = vmatpush1.msra.mxu0 %v673
      %748 = vmatprep.subr.mxu0 0.0
      %749 = vmatpush1.msra.mxu0 %v674
      %750 = vmatprep.subr.mxu0 0.0
      %751 = vmatpush1.msra.mxu0 %v675
      %752 = vmatprep.subr.mxu0 0.0
      %753 = vmatpush1.msra.mxu0 %v676
      %754 = vmatprep.subr.mxu0 0.0
      %755 = vmatpush1.msra.mxu0 %v677
      %756 = vmatprep.subr.mxu0 0.0
      %757 = vmatpush1.msra.mxu0 %v678
      %758 = vmatprep.subr.mxu0 0.0
      %759 = vmatpush1.msra.mxu0 %v679
      %760 = vmatprep.subr.mxu0 0.0
      %761 = vmatpush1.msra.mxu0 %v680
      %762 = vmatprep.subr.mxu0 0.0
      %763 = vmatpush1.msra.mxu0 %v681
      %764 = vmatprep.subr.mxu0 0.0
      %765 = vmatpush1.msra.mxu0 %v682
      %766 = vmatprep.subr.mxu0 0.0
      %767 = vmatpush1.msra.mxu0 %v683
      %768 = vmatprep.subr.mxu0 0.0
      %769 = vmatpush1.msra.mxu0 %v684
      %770 = vmatprep.subr.mxu0 0.0
      %771 = vmatpush1.msra.mxu0 %v685
      %772 = vmatprep.subr.mxu0 0.0
      %773 = vmatpush1.msra.mxu0 %v686
      %774 = vmatprep.mubr.f32.mxu0 %v643
      %775 = vmatmul.mubr.f32.gmra.mrb[0].mxu0 %v635
      %v776 = vpop.f32.mrb[0].mxu0
      %v777 = vadd.f32 %v708, %v776
      %v778 = vpop.f32.mrb[0].mxu0
      %779 = vmatprep.mubr.f32.mxu0 %v645
      %780 = vmatmul.mubr.f32.gmra.mrb[0].mxu0 %v636
      %v781 = vpop.f32.mrb[0].mxu0
      %v782 = vadd.f32 %v708, %v781
      %v783 = vpop.f32.mrb[0].mxu0
      %784 = vdwg.mxu0
      %785 = vmatprep.subr.mxu0 0.0
      %786 = vmatpush1.msra.mxu0 %v687
      %787 = vmatprep.subr.mxu0 0.0
      %788 = vmatpush1.msra.mxu0 %v688
      %789 = vmatprep.subr.mxu0 0.0
      %790 = vmatpush1.msra.mxu0 %v689
      %791 = vmatprep.subr.mxu0 0.0
      %792 = vmatpush1.msra.mxu0 %v690
      %793 = vmatprep.subr.mxu0 0.0
      %794 = vmatpush1.msra.mxu0 %v691
      %795 = vmatprep.subr.mxu0 0.0
      %796 = vmatpush1.msra.mxu0 %v692
      %797 = vmatprep.subr.mxu0 0.0
      %798 = vmatpush1.msra.mxu0 %v693
      %799 = vmatprep.subr.mxu0 0.0
      %800 = vmatpush1.msra.mxu0 %v694
      %801 = vmatprep.subr.mxu0 0.0
      %802 = vmatpush1.msra.mxu0 %v695
      %803 = vmatprep.subr.mxu0 0.0
      %804 = vmatpush1.msra.mxu0 %v696
      %805 = vmatprep.subr.mxu0 0.0
      %806 = vmatpush1.msra.mxu0 %v697
      %807 = vmatprep.subr.mxu0 0.0
      %808 = vmatpush1.msra.mxu0 %v698
      %809 = vmatprep.subr.mxu0 0.0
      %810 = vmatpush1.msra.mxu0 %v699
      %811 = vmatprep.subr.mxu0 0.0
      %812 = vmatpush1.msra.mxu0 %v700
      %813 = vmatprep.subr.mxu0 0.0
      %814 = vmatpush1.msra.mxu0 %v701
      %815 = vmatprep.subr.mxu0 0.0
      %816 = vmatpush1.msra.mxu0 %v702
      %817 = vmatprep.subr.mxu0 0.0
      %818 = vmatpush1.msra.mxu0 0.0
      %819 = vmatprep.subr.mxu0 0.0
      %820 = vmatpush1.msra.mxu0 0.0
      %821 = vmatprep.subr.mxu0 0.0
      %822 = vmatpush1.msra.mxu0 0.0
      %823 = vmatprep.subr.mxu0 0.0
      %824 = vmatpush1.msra.mxu0 0.0
      %825 = vmatprep.subr.mxu0 0.0
      %826 = vmatpush1.msra.mxu0 0.0
      %827 = vmatprep.subr.mxu0 0.0
      %828 = vmatpush1.msra.mxu0 0.0
      %829 = vmatprep.subr.mxu0 0.0
      %830 = vmatpush1.msra.mxu0 0.0
      %831 = vmatprep.subr.mxu0 0.0
      %832 = vmatpush1.msra.mxu0 0.0
      %833 = vmatprep.subr.mxu0 0.0
      %834 = vmatpush1.msra.mxu0 0.0
      %835 = vmatprep.subr.mxu0 0.0
      %836 = vmatpush1.msra.mxu0 0.0
      %837 = vmatprep.subr.mxu0 0.0
      %838 = vmatpush1.msra.mxu0 0.0
      %839 = vmatprep.subr.mxu0 0.0
      %840 = vmatpush1.msra.mxu0 0.0
      %841 = vmatprep.subr.mxu0 0.0
      %842 = vmatpush1.msra.mxu0 0.0
      %843 = vmatprep.subr.mxu0 0.0
      %844 = vmatpush1.msra.mxu0 0.0
      %845 = vmatprep.subr.mxu0 0.0
      %846 = vmatpush1.msra.mxu0 0.0
      %847 = vmatprep.subr.mxu0 0.0
      %848 = vmatpush1.msra.mxu0 0.0
      %849 = vmatprep.mubr.f32.mxu0 0.0
      %850 = vmatmul.mubr.f32.gmra.mrb[0].mxu0 %v650
      %v851 = vpop.f32.mrb[0].mxu0
      %v852 = vadd.f32 %v777, %v851
      %v853 = vpop.f32.mrb[0].mxu0
      %854 = vmatprep.mubr.f32.mxu0 0.0
      %855 = vmatmul.mubr.f32.gmra.mrb[0].mxu0 %v652
      %v856 = vpop.f32.mrb[0].mxu0
      %v857 = vadd.f32 %v782, %v856
      %v858 = vpop.f32.mrb[0].mxu0
      %859 = vdwg.mxu0
      %v860 = vmax.f32 %v852, 0.0
      %v861 = vmax.f32 %v857, 0.0
      %862 = vst [vmem:[%s278] sm:$0xff] %v860
      %863 = vst [vmem:[%s278 + $0x8] sm:$0xff] %v861
      %p864 = scmp.lt.s32.totalorder %s18, 1
      %s865 = scalar_select %p864, %s18, 1
      %s866 = smul.addr %s865, 2
      %s867 = smul.addr %s866, 8
      %s868 = scalar_lea.vmem %s7, %s867
      // Predicated region
      $region49: #{sstgc_forward.1} parent=47 // pred_check
        %p869 = pneg %p188
      $region50: #{sstgc_forward.1} parent=47 // pred_check_branch
        %871 = sbr.rel (%p869) target = $region52
      $region51: #{sstgc_forward.1} parent=47 // pred_region
        _
      $region52: #{sstgc_forward.1} parent=47 // pred_fallthru
        _
    $region48: #{sstgc_forward.1} parent=5 // pred_fallthru
      _
    %p872 = scmp.le.s32.totalorder 2, %s13
    // Predicated region
    $region53: #{sstgc_forward.1} parent=5 // pred_check
      %p873 = pneg %p872
    $region54: #{sstgc_forward.1} parent=5 // pred_check_branch
      %875 = sbr.rel (%p873) target = $region56
    $region55: #{sstgc_forward.1} parent=5 // pred_region
      %s876 = ssub.s32 %s13, 2
      // Predicated region
      $region57: #{sstgc_forward.1} parent=55 // pred_check
        %p877 = pneg %p194
      $region58: #{sstgc_forward.1} parent=55 // pred_check_branch
        %879 = sbr.rel (%p877) target = $region60
      $region59: #{sstgc_forward.1} parent=55 // pred_region
        %p880 = scmp.lt.s32.totalorder %s19, 1
        %s881 = scalar_select %p880, %s19, 1
        %s882 = smul.addr %s881, 2
        %s883 = smul.addr %s882, 8
        %s884 = scalar_lea.vmem %s7, %s883
      $region60: #{sstgc_forward.1} parent=55 // pred_fallthru
        _
    $region56: #{sstgc_forward.1} parent=5 // pred_fallthru
      _
  $region6: #{sstgc_forward.1} parent=0 // loop_footer
    %s17 = sadd.s32 1, %s13
  $region7: #{sstgc_forward.1} parent=0 // loop_footer_branch
    %12 = sbr.rel target = $region3
  $region8: #{sstgc_forward.1} parent=0 // loop_exit
    _

</llo_original>
